<compile_context>
chip_gen: v7x
topology: tpu7x:2x2x1
jax: 0.10.0
libtpu: 0.0.40
codegen_flags: <defaults>
</compile_context>

<pallas_src>
import jax
import jax.numpy as jnp
from jax.experimental import pallas as pl
from jax.experimental.pallas import tpu as pltpu


def recsys_kernel(uid_ref, mid_ref, scores_ref, b_ref, o_ref):
    # uid_ref    : (8, TL)    int32  user ids for this batch tile
    # mid_ref    : (8, TL)    int32  movie ids for this tile, pre-offset by n_users
    # scores_ref : (8, n_pad) f32    fused per-entity score table (rows identical),
    #                                full-array resident VMEM (single copy)
    # b_ref      : (1, 1)     f32    fc bias (SMEM scalar)
    # o_ref      : (8, TL)    f32    output tile (sublane+lane dense)
    tab = scores_ref[...]                                        # (8, n_pad)

    # True lane-axis gather on the resident table (no one-hot, no MXU, no
    # (n, TB) intermediate): out[r, j] = tab[r, idx[r, j]].
    s_u = jnp.take_along_axis(tab, uid_ref[...], axis=1)         # (8, TL)
    s_m = jnp.take_along_axis(tab, mid_ref[...], axis=1)         # (8, TL)

    logits = s_u + s_m + b_ref[0, 0]                             # (8, TL)
    o_ref[...] = 5.0 / (1.0 + jnp.exp(-logits))                  # sigmoid * 5


def recsys_forward(user_ids, movie_ids, user_emb, movie_emb, w, b, *, lane_tile=512):
    """user_emb: (n_users, F), movie_emb: (n_movies, F), w: (1, 2F) (PyTorch
    fc.weight), b: (1,). Returns (B, 1) = sigmoid(concat(u, m) @ w.T + b) * 5."""
    B = user_ids.shape[0]
    n_users, F = user_emb.shape
    n_movies = movie_emb.shape[0]

    # ---- Algebraic collapse (one-time, wrapper-side) -------------------------
    # fc(concat([u, m])) + b == u @ w_u + m @ w_m + b, so precompute per-entity
    # scalar scores; the kernel only gathers scalars and applies the sigmoid.
    w_u = w[0, :F]
    w_m = w[0, F:]
    score_u = user_emb @ w_u                      # (n_users,)
    score_m = movie_emb @ w_m                     # (n_movies,)

    # ---- Fused, lane-padded, sublane-replicated score table ------------------
    n_tot = n_users + n_movies
    n_pad = ((n_tot + 127) // 128) * 128
    scores = jnp.concatenate([score_u, score_m])
    scores = jnp.pad(scores, (0, n_pad - n_tot))
    scores_tab = jnp.broadcast_to(scores[None, :], (8, n_pad)).astype(jnp.float32)

    # ---- Batch tiling: (8, TL) ids per grid step ------------------------------
    # TL = next multiple of 128 covering ceil(B/8), capped at lane_tile.
    tl = min(lane_tile, max(128, ((pl.cdiv(B, 8) + 127) // 128) * 128))
    per_tile = 8 * tl
    num_tiles = pl.cdiv(B, per_tile)
    b_pad = num_tiles * per_tile

    uid = jnp.zeros((b_pad,), jnp.int32).at[:B].set(user_ids.astype(jnp.int32))
    mid = jnp.zeros((b_pad,), jnp.int32).at[:B].set(
        movie_ids.astype(jnp.int32) + n_users)    # fused-table offset; pad -> idx 0
    uid = uid.reshape(num_tiles * 8, tl)
    mid = mid.reshape(num_tiles * 8, tl)

    b2 = b.reshape(1, 1).astype(jnp.float32)

    # ---- Per-generation VMEM budget -------------------------------------------
    try:
        vmem_cap = int(pltpu.get_tpu_info().vmem_capacity_bytes)
    except Exception:
        vmem_cap = 64 * 1024 * 1024               # conservative: v7x per-TensorCore
    table_bytes = int(scores_tab.size) * 4        # single resident copy
    tile_bytes = per_tile * 4
    need = table_bytes + 3 * 2 * tile_bytes + (4 << 20)   # table + dbl-buffered tiles
    vmem_limit = min(int(0.85 * vmem_cap), max(need, 32 << 20))

    grid_spec = pltpu.PrefetchScalarGridSpec(
        num_scalar_prefetch=0,
        grid=(num_tiles,),
        in_specs=[
            pl.BlockSpec((8, tl), lambda i: (i, 0)),            # user id tile
            pl.BlockSpec((8, tl), lambda i: (i, 0)),            # movie id tile
            # Fused score table: full-array VMEM residency, single copy,
            # no per-step windowing -> no double buffering of the constant block.
            pl.BlockSpec(memory_space=pltpu.MemorySpace.VMEM),
            pl.BlockSpec(memory_space=pltpu.MemorySpace.SMEM),  # bias scalar
        ],
        out_specs=pl.BlockSpec((8, tl), lambda i: (i, 0)),
    )

    out = pl.pallas_call(
        recsys_kernel,
        out_shape=jax.ShapeDtypeStruct((num_tiles * 8, tl), jnp.float32),
        grid_spec=grid_spec,
        compiler_params=pltpu.CompilerParams(
            dimension_semantics=("parallel",),   # batch tiles are independent
            vmem_limit_bytes=int(vmem_limit),
        ),
    )(uid, mid, scores_tab, b2)

    return out.reshape(b_pad, 1)[:B]


if __name__ == "__main__":
    # Small, deterministic synthetic setup (module default n_factors=50 shrunk to 32).
    n_users, n_movies, n_factors, batch = 64, 64, 32, 8

    key = jax.random.PRNGKey(0)
    k_ue, k_me, k_w, k_b, k_u, k_m = jax.random.split(key, 6)

    user_emb = jax.random.normal(k_ue, (n_users, n_factors), dtype=jnp.float32)
    movie_emb = jax.random.normal(k_me, (n_movies, n_factors), dtype=jnp.float32)
    # nn.Linear(2F, 1): weight (1, 2F), bias (1,).
    w = jax.random.normal(k_w, (1, 2 * n_factors), dtype=jnp.float32) * 0.1
    b = jax.random.normal(k_b, (1,), dtype=jnp.float32) * 0.1

    user_ids = jax.random.randint(k_u, (batch,), 0, n_users, dtype=jnp.int32)
    movie_ids = jax.random.randint(k_m, (batch,), 0, n_movies, dtype=jnp.int32)

    out = recsys_forward(user_ids, movie_ids, user_emb, movie_emb, w, b)
    out = jax.block_until_ready(out)

    # Pure-JAX reference of the PyTorch forward.
    u_vecs = user_emb[user_ids]                                 # (B, F)
    m_vecs = movie_emb[movie_ids]                               # (B, F)
    x = jnp.concatenate([u_vecs, m_vecs], axis=1)               # (B, 2F)
    ref = jax.nn.sigmoid(x @ w.T + b) * 5.0                     # (B, 1)

    assert out.shape == (batch, 1)
    assert jnp.allclose(out, ref, atol=1e-5, rtol=1e-5), (out, ref)
    print("KERNEL_OK")
</pallas_src>

<mosaic_0001>
module attributes {stable_mosaic.version = 11 : i64} {
  func.func @recsys_kernel(%arg0: i32, %arg1: memref<8x128xi32, #tpu.memory_space<vmem>>, %arg2: memref<8x128xi32, #tpu.memory_space<vmem>>, %arg3: memref<8x128xf32, #tpu.memory_space<vmem>>, %arg4: memref<1x1xf32, #tpu.memory_space<smem>>, %arg5: memref<8x128xf32, #tpu.memory_space<vmem>>) attributes {dimension_semantics = [#tpu.dimension_semantics<parallel>], iteration_bounds = array<i64: 1>, scalar_prefetch = 0 : i64, scratch_operands = 0 : i64, tpu.core_type = #tpu.core_type<tc>, window_params = [{transform_indices = @transform_0, window_bounds = array<i64: 8, 128>}, {transform_indices = @transform_1, window_bounds = array<i64: 8, 128>}, {pipeline_mode = #tpu.pipeline_mode<synchronous>, transform_indices = @transform_2, window_bounds = array<i64: 8, 128>}, {transform_indices = @transform_3, window_bounds = array<i64: 1, 1>}, {transform_indices = @transform_4, window_bounds = array<i64: 8, 128>}]} {
    %c0 = arith.constant 0 : index
    %c0_0 = arith.constant 0 : index
    %0 = vector.load %arg3[%c0, %c0_0] : memref<8x128xf32, #tpu.memory_space<vmem>>, vector<8x128xf32>
    %c0_1 = arith.constant 0 : index
    %c0_2 = arith.constant 0 : index
    %1 = vector.load %arg1[%c0_1, %c0_2] : memref<8x128xi32, #tpu.memory_space<vmem>>, vector<8x128xi32>
    %c0_i32 = arith.constant 0 : i32
    %2 = vector.broadcast %c0_i32 : i32 to vector<8x128xi32>
    %3 = arith.cmpi slt, %1, %2 : vector<8x128xi32>
    %c128_i32 = arith.constant 128 : i32
    %4 = vector.broadcast %c128_i32 : i32 to vector<8x128xi32>
    %5 = arith.addi %1, %4 : vector<8x128xi32>
    %6 = arith.select %3, %5, %1 : vector<8x128xi1>, vector<8x128xi32>
    %7 = vector.shape_cast %6 : vector<8x128xi32> to vector<8x128x1xi32>
    %8 = vector.shape_cast %7 : vector<8x128x1xi32> to vector<8x128xi32>
    %9 = tpu.dynamic_gather %0[%8] in [1] : vector<8x128xf32>, vector<8x128xi32> -> vector<8x128xf32>
    %c0_3 = arith.constant 0 : index
    %c0_4 = arith.constant 0 : index
    %10 = vector.load %arg2[%c0_3, %c0_4] : memref<8x128xi32, #tpu.memory_space<vmem>>, vector<8x128xi32>
    %c0_i32_5 = arith.constant 0 : i32
    %11 = vector.broadcast %c0_i32_5 : i32 to vector<8x128xi32>
    %12 = arith.cmpi slt, %10, %11 : vector<8x128xi32>
    %c128_i32_6 = arith.constant 128 : i32
    %13 = vector.broadcast %c128_i32_6 : i32 to vector<8x128xi32>
    %14 = arith.addi %10, %13 : vector<8x128xi32>
    %15 = arith.select %12, %14, %10 : vector<8x128xi1>, vector<8x128xi32>
    %16 = vector.shape_cast %15 : vector<8x128xi32> to vector<8x128x1xi32>
    %17 = vector.shape_cast %16 : vector<8x128x1xi32> to vector<8x128xi32>
    %18 = tpu.dynamic_gather %0[%17] in [1] : vector<8x128xf32>, vector<8x128xi32> -> vector<8x128xf32>
    %19 = arith.addf %9, %18 : vector<8x128xf32>
    %c0_7 = arith.constant 0 : index
    %c0_8 = arith.constant 0 : index
    %20 = memref.load %arg4[%c0_7, %c0_8] : memref<1x1xf32, #tpu.memory_space<smem>>
    %21 = vector.broadcast %20 : f32 to vector<8x128xf32>
    %22 = arith.addf %19, %21 : vector<8x128xf32>
    %cst = arith.constant 0.000000e+00 : f32
    %23 = vector.broadcast %cst : f32 to vector<8x128xf32>
    %24 = arith.subf %23, %22 : vector<8x128xf32>
    %25 = math.exp %24 : vector<8x128xf32>
    %cst_9 = arith.constant 1.000000e+00 : f32
    %26 = vector.broadcast %cst_9 : f32 to vector<8x128xf32>
    %27 = arith.addf %26, %25 : vector<8x128xf32>
    %cst_10 = arith.constant 5.000000e+00 : f32
    %28 = vector.broadcast %cst_10 : f32 to vector<8x128xf32>
    %29 = arith.divf %28, %27 : vector<8x128xf32>
    %c0_11 = arith.constant 0 : index
    %c0_12 = arith.constant 0 : index
    %30 = vector.load %arg5[%c0_11, %c0_12] : memref<8x128xf32, #tpu.memory_space<vmem>>, vector<8x128xf32>
    tpu.vector_store %arg5[%c0_11, %c0_12], %29 {strides = array<i32>} : memref<8x128xf32, #tpu.memory_space<vmem>>, vector<8x128xf32>,
    return
  }
  func.func @transform_0(%arg0: i32) -> (i32, i32) {
    %c0_i32 = arith.constant 0 : i32
    %c0_i32_0 = arith.constant 0 : i32
    return %arg0, %c0_i32 : i32, i32
  }
  func.func @transform_1(%arg0: i32) -> (i32, i32) {
    %c0_i32 = arith.constant 0 : i32
    %c0_i32_0 = arith.constant 0 : i32
    return %arg0, %c0_i32 : i32, i32
  }
  func.func @transform_2(%arg0: i32) -> (i32, i32) {
    %c0_i32 = arith.constant 0 : i32
    %c0_i32_0 = arith.constant 0 : i32
    %c0_i32_1 = arith.constant 0 : i32
    return %c0_i32, %c0_i32_0 : i32, i32
  }
  func.func @transform_3(%arg0: i32) -> (i32, i32) {
    %c0_i32 = arith.constant 0 : i32
    %c0_i32_0 = arith.constant 0 : i32
    %c0_i32_1 = arith.constant 0 : i32
    return %c0_i32, %c0_i32_0 : i32, i32
  }
  func.func @transform_4(%arg0: i32) -> (i32, i32) {
    %c0_i32 = arith.constant 0 : i32
    %c0_i32_0 = arith.constant 0 : i32
    return %arg0, %c0_i32 : i32, i32
  }
}

</mosaic_0001>

<llo_original>
// kernel: tpu_custom_call.1
$region0: #{tpu_custom_call.1}
  #allocation0 [shape = 'u32[]', space=smem, size = 0x4, offset = 0x4, fixed_abs, tag = 'smem constant byte address 0x4 - core index']
  #allocation1 [shape = 'u32[144,128]{1,0:T(1,128)}', space=vmem, size = 0x12000, scoped, tag = 'internal scratch']
  #allocation2 [shape = 'f32[1,1]{1,0:T(1,128)S(6)}', space=smem, size = 0x200, scoped, tag = 'scoped memory for tpu_custom_call.1']
  %s0 = inlined_call_operand.hbm [shape: s32[8,128], index: 0, kind: input, shape index: {}]
  %s1 = inlined_call_operand.hbm [shape: s32[8,128], index: 1, kind: input, shape index: {}]
  %s2 = inlined_call_operand.vmem [shape: f32[8,128], index: 2, kind: input, shape index: {}]
  %s3 = inlined_call_operand.<no memory space> [shape: f32[1,1], index: 3, kind: input, shape index: {}]
  %s4 = inlined_call_operand.hbm [shape: f32[8,128], index: 4, kind: output, shape index: {}]
  %s5 = sld [smem:[#allocation0]]
  $region34: #{tpu_custom_call.1} parent=0
    _
  %s7 = ssub.s32 1, %s5
  %s8 = scalar_select 0, %s7, %s5
  %9 = sst [smem:[#allocation2]] %s3
  $region1: #{tpu_custom_call.1} parent=0
    #allocation3 [shape = 'u8[4096]{0}', space=vmem, size = 0x1000, scoped, tag = 'input window, operand 0, single buffered']
    #allocation4 [shape = 's32[1]{0}', space=sflag, size = 0x4, scoped, tag = 'scoped memory for tpu_custom_call.1']
    #allocation5 [shape = 's32[1]{0}', space=sflag, size = 0x4, scoped, tag = 'scoped memory for tpu_custom_call.1']
    #allocation6 [shape = 'u8[4096]{0}', space=vmem, size = 0x1000, scoped, tag = 'input window, operand 1, single buffered']
    #allocation7 [shape = 's32[1]{0}', space=sflag, size = 0x4, scoped, tag = 'scoped memory for tpu_custom_call.1']
    #allocation8 [shape = 'u8[4096]{0}', space=vmem, size = 0x1000, scoped, tag = 'output window, operand 0, single buffered']
    %10 = vsyncpa [#allocation4], 0
    %11 = vsyncpa [#allocation7], 0
    %12 = vsyncpa [#allocation5], 0
    // Predicated region
    $region2: #{tpu_custom_call.1} parent=1 // pred_check
      _
    $region3: #{tpu_custom_call.1} parent=1 // pred_check_branch
      %14 = sbr.rel (0) target = $region5
    $region4: #{tpu_custom_call.1} parent=1 // pred_region
      %s16 = ssub.s32 128, 128
      %17 = vsyncadd [#allocation4], %s16
      %s19 = sshll.u32 [#allocation3], 4
      %s20 = int_to_ptr.vmem [resolvable:$true] %s19
      %22 = dma.hbm_to_vmem [thread:$0]  %s0, 128, %s20, [#allocation4]
    $region5: #{tpu_custom_call.1} parent=1 // pred_fallthru
      _
    // Predicated region
    $region6: #{tpu_custom_call.1} parent=1 // pred_check
      _
    $region7: #{tpu_custom_call.1} parent=1 // pred_check_branch
      %24 = sbr.rel (0) target = $region9
    $region8: #{tpu_custom_call.1} parent=1 // pred_region
      %s26 = ssub.s32 128, 128
      %27 = vsyncadd [#allocation7], %s26
      %s29 = sshll.u32 [#allocation6], 4
      %s30 = int_to_ptr.vmem [resolvable:$true] %s29
      %32 = dma.hbm_to_vmem [thread:$0]  %s1, 128, %s30, [#allocation7]
    $region9: #{tpu_custom_call.1} parent=1 // pred_fallthru
      _
    // Predicated region
    $region10: #{tpu_custom_call.1} parent=1 // pred_check
      _
    $region11: #{tpu_custom_call.1} parent=1 // pred_check_branch
      %34 = sbr.rel (0) target = $region13
    $region12: #{tpu_custom_call.1} parent=1 // pred_region
      _
    $region13: #{tpu_custom_call.1} parent=1 // pred_fallthru
      _
    // Predicated region
    $region14: #{tpu_custom_call.1} parent=1 // pred_check
      _
    $region15: #{tpu_custom_call.1} parent=1 // pred_check_branch
      %36 = sbr.rel (0) target = $region17
    $region16: #{tpu_custom_call.1} parent=1 // pred_region
      _
    $region17: #{tpu_custom_call.1} parent=1 // pred_fallthru
      _
    // Predicated region
    $region18: #{tpu_custom_call.1} parent=1 // pred_check
      _
    $region19: #{tpu_custom_call.1} parent=1 // pred_check_branch
      %38 = sbr.rel (0) target = $region21
    $region20: #{tpu_custom_call.1} parent=1 // pred_region
      %39 = dma.done [#allocation4], 128
    $region21: #{tpu_custom_call.1} parent=1 // pred_fallthru
      _
    // Predicated region
    $region22: #{tpu_custom_call.1} parent=1 // pred_check
      _
    $region23: #{tpu_custom_call.1} parent=1 // pred_check_branch
      %41 = sbr.rel (0) target = $region25
    $region24: #{tpu_custom_call.1} parent=1 // pred_region
      %42 = dma.done [#allocation7], 128
    $region25: #{tpu_custom_call.1} parent=1 // pred_fallthru
      _
    %v43 = vld [vmem:[%s2] sm:$0xff]
    %v44 = vld [vmem:[#allocation3] sm:$0xff]
    %vm45 = vcmp.lt.s32.totalorder %v44, 0
    %v46 = vadd.s32 %v44, 128
    %v47 = vsel %vm45, %v46, %v44
    %48 = vset.pattern.permute.xlu0 %v47
    %49 = vperm.xlu0 %48, %v43
    %v50 = vpop.permute.xlu0 %49
    %v51 = vld [vmem:[#allocation6] sm:$0xff]
    %vm52 = vcmp.lt.s32.totalorder %v51, 0
    %v53 = vadd.s32 %v51, 128
    %v54 = vsel %vm52, %v53, %v51
    %55 = vset.pattern.permute.xlu0 %v54
    %56 = vperm.xlu0 %55, %v43
    %v57 = vpop.permute.xlu0 %56
    %v58 = vadd.f32 %v50, %v57
    %s59 = sld [smem:[#allocation2]]
    %v60 = vstv %s59
    %v61 = vadd.f32 %v58, %v60
    %v62 = vsub.f32 0.0, %v61
    %v63 = vmul.f32 %v62, 1.442695
    %v64 = vpow.pop %v63
    %v65 = vadd.f32 %v64, 1.0
    %v66 = vrcp.pop %v65
    %v67 = vmul.f32 5.0, %v66
    %68 = vst [vmem:[#allocation8] sm:$0xff] %v67
    // Predicated region
    $region26: #{tpu_custom_call.1} parent=1 // pred_check
      _
    $region27: #{tpu_custom_call.1} parent=1 // pred_check_branch
      %70 = sbr.rel (0) target = $region29
    $region28: #{tpu_custom_call.1} parent=1 // pred_region
      %s72 = ssub.s32 128, 128
      %73 = vsyncadd [#allocation5], %s72
      %s75 = sshll.u32 [#allocation8], 4
      %s76 = int_to_ptr.vmem [resolvable:$true] %s75
      %78 = dma.vmem_to_hbm [thread:$0]  %s76, 128, %s4, [#allocation5]
    $region29: #{tpu_custom_call.1} parent=1 // pred_fallthru
      _
    // Predicated region
    $region30: #{tpu_custom_call.1} parent=1 // pred_check
      _
    $region31: #{tpu_custom_call.1} parent=1 // pred_check_branch
      %80 = sbr.rel (0) target = $region33
    $region32: #{tpu_custom_call.1} parent=1 // pred_region
      %81 = dma.done [#allocation5], 128
    $region33: #{tpu_custom_call.1} parent=1 // pred_fallthru
      _
    %82 = vsyncpa [#allocation4], 1
    %83 = vsyncpa [#allocation7], 1
    %84 = vsyncpa [#allocation5], 1

</llo_original>
